<compile_context>
chip_gen: v5e
topology: v5e:2x2
jax: 0.10.0
libtpu: 0.0.40
codegen_flags: <defaults>
</compile_context>

<pallas_src>
import functools

import jax
import jax.numpy as jnp
import numpy as np
from jax.experimental import pallas as pl
from jax.experimental.pallas import tpu as pltpu

# ----------------------------- model config -----------------------------
OUTPUT_DIM = 32   # vocab size
EMB_DIM    = 16
HID_DIM    = 32
N_LAYERS   = 2
BATCH      = 8
KT_MAX     = 16   # decode steps fused per grid iteration (amortizes overhead)

GATES = 4 * HID_DIM                          # 128 lanes (one full vreg width)

# Row layout of the packed weight slab ([R_TOT, 128] f32, all offsets % 8 == 0)
R_WHH0 = 0                                   # W_hh0.T  [H, 4H]
R_WIH1 = R_WHH0 + HID_DIM                    # W_ih1.T  [H, 4H]
R_WHH1 = R_WIH1 + HID_DIM                    # W_hh1.T  [H, 4H]
R_B1   = R_WHH1 + HID_DIM                    # b_ih1 + b_hh1 (row R_B1)
R_WFC  = R_B1 + 8                            # W_fc.T   [H, 128] (lanes 0:V)
R_BFC  = R_WFC + HID_DIM                     # b_fc     (lanes 0:V)
R_TOT  = R_BFC + 8

assert GATES == 128 and OUTPUT_DIM <= GATES
assert all(r % 8 == 0 for r in
           (R_WHH0, R_WIH1, R_WHH1, R_B1, R_WFC, R_BFC, R_TOT))


# ----------------------------- Pallas kernel -----------------------------
def _lstm_gates(gates, c_prev):
    """PyTorch gate order (i, f, g, o). Full-vreg EUP activations, then slices."""
    H = HID_DIM
    sg = jax.nn.sigmoid(gates)               # one EUP pass over the whole vreg
    th = jnp.tanh(gates)                     # one EUP pass over the whole vreg
    i_g = sg[:, 0 * H:1 * H]
    f_g = sg[:, 1 * H:2 * H]
    g_g = th[:, 2 * H:3 * H]
    o_g = sg[:, 3 * H:4 * H]
    c_new = f_g * c_prev + i_g * g_g
    h_new = o_g * jnp.tanh(c_new)
    return h_new, c_new


def decoder_kernel(w_ref,      # VMEM [R_TOT, 128] packed weights (resident)
                   init_ref,   # VMEM [4, B, H] initial state (h0|h1|c0|c1)
                   xg_ref,     # VMEM [KT, B, 128] streamed layer-0 input gates
                   pred_ref,   # VMEM [KT, B, 128] per-step logits (lane-dense)
                   state_ref,  # VMEM [4, B, H] carried state (resident out)
                   *, t_total, guard):
    i = pl.program_id(0)
    KT = xg_ref.shape[0]
    B = init_ref.shape[1]
    H = HID_DIM

    # Resident output block (constant block index) doubles as the h/c carry.
    @pl.when(i == 0)
    def _():
        state_ref[...] = init_ref[...]

    # Hoisted out of the step loop: weights + biases (biases broadcast once
    # per chunk, not per step).
    w_hh0 = w_ref[R_WHH0:R_WHH0 + H, :]
    w_ih1 = w_ref[R_WIH1:R_WIH1 + H, :]
    w_hh1 = w_ref[R_WHH1:R_WHH1 + H, :]
    w_fc  = w_ref[R_WFC:R_WFC + H, :]
    b1  = jnp.broadcast_to(w_ref[R_B1:R_B1 + 1, :], (B, GATES))
    bfc = jnp.broadcast_to(w_ref[R_BFC:R_BFC + 1, :], (B, GATES))

    chunk_start = i * KT

    def step(k, carry):
        h0, h1, c0, c1 = carry
        # Layer 0: streamed (x @ W_ih0.T + b0) + one recurrent dot.
        g0 = xg_ref[k] + jnp.dot(h0, w_hh0, preferred_element_type=jnp.float32)
        h0n, c0n = _lstm_gates(g0, c0)
        # TODO(synk): training-mode dropout between LSTM layers not implemented.
        # Layer 1: two dots + VPU adds (no lane concatenation).
        g1 = (jnp.dot(h0n, w_ih1, preferred_element_type=jnp.float32)
              + jnp.dot(h1, w_hh1, preferred_element_type=jnp.float32)
              + b1)
        h1n, c1n = _lstm_gates(g1, c1)
        # fc_out: [B, H] @ [H, 128] (vocab lanes 0:V, rest zero) + bias.
        pred_ref[k] = (jnp.dot(h1n, w_fc, preferred_element_type=jnp.float32)
                       + bfc)
        if guard:   # only traced when T % KT != 0: freeze state on pad steps
            valid = (chunk_start + k) < t_total
            h0n = jnp.where(valid, h0n, h0)
            h1n = jnp.where(valid, h1n, h1)
            c0n = jnp.where(valid, c0n, c0)
            c1n = jnp.where(valid, c1n, c1)
        return h0n, h1n, c0n, c1n

    carry0 = (state_ref[0], state_ref[1], state_ref[2], state_ref[3])
    h0, h1, c0, c1 = jax.lax.fori_loop(0, KT, step, carry0, unroll=True)

    # Write the carry back once per chunk (sublane-major slices, no lane ops).
    state_ref[0] = h0
    state_ref[1] = h1
    state_ref[2] = c0
    state_ref[3] = c1


# ----------------------------- packing & wrappers -----------------------------
def pack_decoder_params(params):
    """One-time packing: weight slab [R_TOT, 128] + folded embedding table."""
    H, V = HID_DIM, OUTPUT_DIM
    slab = jnp.zeros((R_TOT, GATES), jnp.float32)
    slab = slab.at[R_WHH0:R_WHH0 + H, :].set(params["w_hh"][0].T)
    slab = slab.at[R_WIH1:R_WIH1 + H, :].set(params["w_ih"][1].T)
    slab = slab.at[R_WHH1:R_WHH1 + H, :].set(params["w_hh"][1].T)
    slab = slab.at[R_B1, :].set(params["b_ih"][1] + params["b_hh"][1])
    slab = slab.at[R_WFC:R_WFC + H, :V].set(params["w_fc"].T)
    slab = slab.at[R_BFC, :V].set(params["b_fc"])
    # Fold embedding + layer-0 input weights + layer-0 biases:
    #   x_table[v] = Emb[v] @ W_ih0.T + b_ih0 + b_hh0            -> [V, 4H]
    x_table = (jnp.dot(params["embedding"].astype(jnp.float32),
                       params["w_ih"][0].T)
               + params["b_ih"][0] + params["b_hh"][0])
    return slab, x_table


@jax.jit
def decoder_forward_multistep(tokens, hidden, cell, w_slab, x_table):
    """Runs T fused Decoder.forward steps (tokens[t] is the step-t input).

    Returns (predictions [T, B, V], hidden [L, B, H], cell [L, B, H])."""
    T, B = tokens.shape
    L, _, H = hidden.shape
    KT = min(KT_MAX, T)
    n_chunks = pl.cdiv(T, KT)
    T_pad = n_chunks * KT

    if T_pad != T:                                   # pad the tail chunk
        pad = jnp.zeros((T_pad - T, B), tokens.dtype)
        tokens = jnp.concatenate([tokens, pad], axis=0)

    # Exact embedding gather + layer-0 input matmul + bias, done once outside
    # the recurrence and streamed into the kernel (hidden by the pipeline).
    x_gates = x_table[tokens]                        # [T_pad, B, 4H]
    # TODO(synk): training-mode dropout on the embedded input not implemented.

    state0 = jnp.concatenate([hidden, cell], axis=0)  # [4, B, H] = h0|h1|c0|c1

    kernel = functools.partial(decoder_kernel, t_total=T, guard=(T_pad != T))

    preds_pad, state_out = pl.pallas_call(
        kernel,
        grid=(n_chunks,),
        in_specs=[
            pl.BlockSpec((R_TOT, GATES), lambda i: (0, 0)),      # weights
            pl.BlockSpec((2 * L, B, H), lambda i: (0, 0, 0)),    # init state
            pl.BlockSpec((KT, B, GATES), lambda i: (i, 0, 0)),   # x gates
        ],
        out_specs=(
            pl.BlockSpec((KT, B, GATES), lambda i: (i, 0, 0)),   # logits
            pl.BlockSpec((2 * L, B, H), lambda i: (0, 0, 0)),    # final state
        ),
        out_shape=(jax.ShapeDtypeStruct((T_pad, B, GATES), jnp.float32),
                   jax.ShapeDtypeStruct((2 * L, B, H), jnp.float32)),
        compiler_params=pltpu.CompilerParams(
            dimension_semantics=("arbitrary",)),      # sequential recurrence
    )(w_slab, state0, x_gates)

    preds = preds_pad[:T, :, :OUTPUT_DIM]
    return preds, state_out[:L], state_out[L:]


def decoder_forward(input_ids, hidden, cell, w_slab, x_table):
    """Module-equivalent single-step Decoder.forward(input, hidden, cell)."""
    preds, h_out, c_out = decoder_forward_multistep(
        input_ids[None, :], hidden, cell, w_slab, x_table)
    return preds[0], h_out, c_out


# ----------------------------- pure-JAX reference -----------------------------
def decoder_reference(input_ids, hidden, cell, params):
    x = params["embedding"][input_ids].astype(jnp.float32)
    H = HID_DIM
    h_new_all, c_new_all = [], []
    inp = x
    for l in range(N_LAYERS):
        gates = (inp @ params["w_ih"][l].T + params["b_ih"][l]
                 + hidden[l] @ params["w_hh"][l].T + params["b_hh"][l])
        i_g = jax.nn.sigmoid(gates[:, 0 * H:1 * H])
        f_g = jax.nn.sigmoid(gates[:, 1 * H:2 * H])
        g_g = jnp.tanh(gates[:, 2 * H:3 * H])
        o_g = jax.nn.sigmoid(gates[:, 3 * H:4 * H])
        c_n = f_g * cell[l] + i_g * g_g
        h_n = o_g * jnp.tanh(c_n)
        h_new_all.append(h_n)
        c_new_all.append(c_n)
        inp = h_n
    pred = inp @ params["w_fc"].T + params["b_fc"]
    return pred, jnp.stack(h_new_all), jnp.stack(c_new_all)


# ----------------------------- parameter init -----------------------------
def init_params(key):
    ks = jax.random.split(key, 16)
    k = 1.0 / np.sqrt(HID_DIM)

    def uni(key, shape):
        return jax.random.uniform(key, shape, jnp.float32, -k, k)

    emb = jax.random.normal(ks[0], (OUTPUT_DIM, EMB_DIM), jnp.float32)
    w_ih = [uni(ks[1], (4 * HID_DIM, EMB_DIM)),
            uni(ks[2], (4 * HID_DIM, HID_DIM))]
    w_hh = [uni(ks[3], (4 * HID_DIM, HID_DIM)),
            uni(ks[4], (4 * HID_DIM, HID_DIM))]
    b_ih = [uni(ks[5], (4 * HID_DIM,)), uni(ks[6], (4 * HID_DIM,))]
    b_hh = [uni(ks[7], (4 * HID_DIM,)), uni(ks[8], (4 * HID_DIM,))]
    w_fc = uni(ks[9], (OUTPUT_DIM, HID_DIM))
    b_fc = uni(ks[10], (OUTPUT_DIM,))
    return {"embedding": emb, "w_ih": w_ih, "w_hh": w_hh,
            "b_ih": b_ih, "b_hh": b_hh, "w_fc": w_fc, "b_fc": b_fc}


def _close(a, b, atol):
    return np.allclose(np.asarray(a), np.asarray(b), rtol=1e-3, atol=atol)


# ----------------------------- main -----------------------------
if __name__ == "__main__":
    key = jax.random.PRNGKey(0)
    k_in, k_h, k_c, k_p, k_seq = jax.random.split(key, 5)

    params = init_params(k_p)
    w_slab, x_table = pack_decoder_params(params)    # one-time packing

    input_ids = jax.random.randint(k_in, (BATCH,), 0, OUTPUT_DIM, dtype=jnp.int32)
    hidden = jax.random.normal(k_h, (N_LAYERS, BATCH, HID_DIM), jnp.float32)
    cell = jax.random.normal(k_c, (N_LAYERS, BATCH, HID_DIM), jnp.float32)

    # --- single step: exactly Decoder.forward(input, hidden, cell) ---
    pred, h1, c1 = decoder_forward(input_ids, hidden, cell, w_slab, x_table)
    jax.block_until_ready((pred, h1, c1))
    pred_r, h_r, c_r = decoder_reference(input_ids, hidden, cell, params)
    assert _close(pred, pred_r, 1e-3)
    assert _close(h1, h_r, 1e-3)
    assert _close(c1, c_r, 1e-3)

    # --- fused multi-step decode: exercises chunking (KT=16) + tail padding ---
    T = 20
    tokens = jax.random.randint(k_seq, (T, BATCH), 0, OUTPUT_DIM, dtype=jnp.int32)
    preds, hT, cT = decoder_forward_multistep(tokens, hidden, cell, w_slab, x_table)
    jax.block_until_ready((preds, hT, cT))

    h_ref, c_ref = hidden, cell
    for t in range(T):
        p_ref, h_ref, c_ref = decoder_reference(tokens[t], h_ref, c_ref, params)
        assert _close(preds[t], p_ref, 2e-3)
    assert _close(hT, h_ref, 2e-3)
    assert _close(cT, c_ref, 2e-3)

    print("KERNEL_OK")
</pallas_src>

<mosaic_0001>
module attributes {stable_mosaic.version = 11 : i64} {
  func.func @decoder_kernel(%arg0: i32, %arg1: memref<144x128xf32, #tpu.memory_space<vmem>>, %arg2: memref<4x8x32xf32, #tpu.memory_space<vmem>>, %arg3: memref<1x8x128xf32, #tpu.memory_space<vmem>>, %arg4: memref<1x8x128xf32, #tpu.memory_space<vmem>>, %arg5: memref<4x8x32xf32, #tpu.memory_space<vmem>>) attributes {dimension_semantics = [#tpu.dimension_semantics<arbitrary>], iteration_bounds = array<i64: 1>, scalar_prefetch = 0 : i64, scratch_operands = 0 : i64, tpu.core_type = #tpu.core_type<tc>, window_params = [{pipeline_mode = #tpu.pipeline_mode<synchronous>, transform_indices = @transform_0, window_bounds = array<i64: 144, 128>}, {pipeline_mode = #tpu.pipeline_mode<synchronous>, transform_indices = @transform_1, window_bounds = array<i64: 4, 8, 32>}, {transform_indices = @transform_2, window_bounds = array<i64: 1, 8, 128>}, {transform_indices = @transform_3, window_bounds = array<i64: 1, 8, 128>}, {pipeline_mode = #tpu.pipeline_mode<synchronous>, transform_indices = @transform_4, window_bounds = array<i64: 4, 8, 32>}]} {
    %c0_i32 = arith.constant 0 : i32
    %0 = arith.cmpi eq, %arg0, %c0_i32 : i32
    %1 = arith.extui %0 : i1 to i32
    %c0_i32_0 = arith.constant 0 : i32
    %2 = arith.cmpi ne, %1, %c0_i32_0 : i32
    scf.if %2 {
      %c0_38 = arith.constant 0 : index
      %c0_39 = arith.constant 0 : index
      %c0_40 = arith.constant 0 : index
      %78 = vector.load %arg2[%c0_38, %c0_39, %c0_40] : memref<4x8x32xf32, #tpu.memory_space<vmem>>, vector<4x8x32xf32>
      %c0_41 = arith.constant 0 : index
      %c0_42 = arith.constant 0 : index
      %c0_43 = arith.constant 0 : index
      %79 = vector.load %arg5[%c0_41, %c0_42, %c0_43] : memref<4x8x32xf32, #tpu.memory_space<vmem>>, vector<4x8x32xf32>
      tpu.vector_store %arg5[%c0_41, %c0_42, %c0_43], %78 {strides = array<i32>} : memref<4x8x32xf32, #tpu.memory_space<vmem>>, vector<4x8x32xf32>,
    } else {
    }
    %c0 = arith.constant 0 : index
    %c0_1 = arith.constant 0 : index
    %3 = vector.load %arg1[%c0, %c0_1] : memref<144x128xf32, #tpu.memory_space<vmem>>, vector<32x128xf32>
    %c32 = arith.constant 32 : index
    %c0_2 = arith.constant 0 : index
    %4 = vector.load %arg1[%c32, %c0_2] : memref<144x128xf32, #tpu.memory_space<vmem>>, vector<32x128xf32>
    %c64 = arith.constant 64 : index
    %c0_3 = arith.constant 0 : index
    %5 = vector.load %arg1[%c64, %c0_3] : memref<144x128xf32, #tpu.memory_space<vmem>>, vector<32x128xf32>
    %c104 = arith.constant 104 : index
    %c0_4 = arith.constant 0 : index
    %6 = vector.load %arg1[%c104, %c0_4] : memref<144x128xf32, #tpu.memory_space<vmem>>, vector<32x128xf32>
    %c96 = arith.constant 96 : index
    %c0_5 = arith.constant 0 : index
    %7 = vector.load %arg1[%c96, %c0_5] : memref<144x128xf32, #tpu.memory_space<vmem>>, vector<1x128xf32>
    %8 = vector.shape_cast %7 : vector<1x128xf32> to vector<1x128xf32>
    %9 = vector.broadcast %8 : vector<1x128xf32> to vector<8x128xf32>
    %c136 = arith.constant 136 : index
    %c0_6 = arith.constant 0 : index
    %10 = vector.load %arg1[%c136, %c0_6] : memref<144x128xf32, #tpu.memory_space<vmem>>, vector<1x128xf32>
    %11 = vector.shape_cast %10 : vector<1x128xf32> to vector<1x128xf32>
    %12 = vector.broadcast %11 : vector<1x128xf32> to vector<8x128xf32>
    %c0_7 = arith.constant 0 : index
    %c0_8 = arith.constant 0 : index
    %c0_9 = arith.constant 0 : index
    %13 = vector.load %arg5[%c0_7, %c0_8, %c0_9] : memref<4x8x32xf32, #tpu.memory_space<vmem>>, vector<1x8x32xf32>
    %14 = vector.shape_cast %13 : vector<1x8x32xf32> to vector<8x32xf32>
    %c1 = arith.constant 1 : index
    %c0_10 = arith.constant 0 : index
    %c0_11 = arith.constant 0 : index
    %15 = vector.load %arg5[%c1, %c0_10, %c0_11] : memref<4x8x32xf32, #tpu.memory_space<vmem>>, vector<1x8x32xf32>
    %16 = vector.shape_cast %15 : vector<1x8x32xf32> to vector<8x32xf32>
    %c2 = arith.constant 2 : index
    %c0_12 = arith.constant 0 : index
    %c0_13 = arith.constant 0 : index
    %17 = vector.load %arg5[%c2, %c0_12, %c0_13] : memref<4x8x32xf32, #tpu.memory_space<vmem>>, vector<1x8x32xf32>
    %18 = vector.shape_cast %17 : vector<1x8x32xf32> to vector<8x32xf32>
    %c3 = arith.constant 3 : index
    %c0_14 = arith.constant 0 : index
    %c0_15 = arith.constant 0 : index
    %19 = vector.load %arg5[%c3, %c0_14, %c0_15] : memref<4x8x32xf32, #tpu.memory_space<vmem>>, vector<1x8x32xf32>
    %20 = vector.shape_cast %19 : vector<1x8x32xf32> to vector<8x32xf32>
    %c0_i32_16 = arith.constant 0 : i32
    %21 = arith.index_cast %c0_i32_16 : i32 to index
    %c0_17 = arith.constant 0 : index
    %c0_18 = arith.constant 0 : index
    %22 = vector.load %arg3[%21, %c0_17, %c0_18] : memref<1x8x128xf32, #tpu.memory_space<vmem>>, vector<1x8x128xf32>
    %23 = vector.shape_cast %22 : vector<1x8x128xf32> to vector<8x128xf32>
    %cst = arith.constant dense<0.000000e+00> : vector<8x128xf32>
    %24 = tpu.matmul %14, %3, %cst {dimension_numbers = #tpu.dot_dimension_numbers<[1], [0], [0], [1], [0, 0, 1, 1], [], []>} : vector<8x32xf32>, vector<32x128xf32>, vector<8x128xf32> -> vector<8x128xf32>
    %25 = arith.addf %23, %24 : vector<8x128xf32>
    %26 = arith.negf %25 : vector<8x128xf32>
    %27 = math.exp %26 : vector<8x128xf32>
    %cst_19 = arith.constant 1.000000e+00 : f32
    %28 = vector.broadcast %cst_19 : f32 to vector<8x128xf32>
    %29 = arith.addf %28, %27 : vector<8x128xf32>
    %30 = arith.divf %28, %29 : vector<8x128xf32>
    %31 = math.tanh %25 : vector<8x128xf32>
    %32 = vector.extract_strided_slice %30 {offsets = [0, 0], sizes = [8, 32], strides = [1, 1]} : vector<8x128xf32> to vector<8x32xf32>
    %33 = vector.extract_strided_slice %30 {offsets = [0, 32], sizes = [8, 32], strides = [1, 1]} : vector<8x128xf32> to vector<8x32xf32>
    %34 = vector.extract_strided_slice %31 {offsets = [0, 64], sizes = [8, 32], strides = [1, 1]} : vector<8x128xf32> to vector<8x32xf32>
    %35 = vector.extract_strided_slice %30 {offsets = [0, 96], sizes = [8, 32], strides = [1, 1]} : vector<8x128xf32> to vector<8x32xf32>
    %36 = arith.mulf %33, %18 : vector<8x32xf32>
    %37 = arith.mulf %32, %34 : vector<8x32xf32>
    %38 = arith.addf %36, %37 : vector<8x32xf32>
    %39 = math.tanh %38 : vector<8x32xf32>
    %40 = arith.mulf %35, %39 : vector<8x32xf32>
    %cst_20 = arith.constant dense<0.000000e+00> : vector<8x128xf32>
    %41 = tpu.matmul %40, %4, %cst_20 {dimension_numbers = #tpu.dot_dimension_numbers<[1], [0], [0], [1], [0, 0, 1, 1], [], []>} : vector<8x32xf32>, vector<32x128xf32>, vector<8x128xf32> -> vector<8x128xf32>
    %cst_21 = arith.constant dense<0.000000e+00> : vector<8x128xf32>
    %42 = tpu.matmul %16, %5, %cst_21 {dimension_numbers = #tpu.dot_dimension_numbers<[1], [0], [0], [1], [0, 0, 1, 1], [], []>} : vector<8x32xf32>, vector<32x128xf32>, vector<8x128xf32> -> vector<8x128xf32>
    %43 = arith.addf %41, %42 : vector<8x128xf32>
    %44 = arith.addf %43, %9 : vector<8x128xf32>
    %45 = arith.negf %44 : vector<8x128xf32>
    %46 = math.exp %45 : vector<8x128xf32>
    %cst_22 = arith.constant 1.000000e+00 : f32
    %47 = vector.broadcast %cst_22 : f32 to vector<8x128xf32>
    %48 = arith.addf %47, %46 : vector<8x128xf32>
    %49 = arith.divf %47, %48 : vector<8x128xf32>
    %50 = math.tanh %44 : vector<8x128xf32>
    %51 = vector.extract_strided_slice %49 {offsets = [0, 0], sizes = [8, 32], strides = [1, 1]} : vector<8x128xf32> to vector<8x32xf32>
    %52 = vector.extract_strided_slice %49 {offsets = [0, 32], sizes = [8, 32], strides = [1, 1]} : vector<8x128xf32> to vector<8x32xf32>
    %53 = vector.extract_strided_slice %50 {offsets = [0, 64], sizes = [8, 32], strides = [1, 1]} : vector<8x128xf32> to vector<8x32xf32>
    %54 = vector.extract_strided_slice %49 {offsets = [0, 96], sizes = [8, 32], strides = [1, 1]} : vector<8x128xf32> to vector<8x32xf32>
    %55 = arith.mulf %52, %20 : vector<8x32xf32>
    %56 = arith.mulf %51, %53 : vector<8x32xf32>
    %57 = arith.addf %55, %56 : vector<8x32xf32>
    %58 = math.tanh %57 : vector<8x32xf32>
    %59 = arith.mulf %54, %58 : vector<8x32xf32>
    %cst_23 = arith.constant dense<0.000000e+00> : vector<8x128xf32>
    %60 = tpu.matmul %59, %6, %cst_23 {dimension_numbers = #tpu.dot_dimension_numbers<[1], [0], [0], [1], [0, 0, 1, 1], [], []>} : vector<8x32xf32>, vector<32x128xf32>, vector<8x128xf32> -> vector<8x128xf32>
    %61 = arith.addf %60, %12 : vector<8x128xf32>
    %62 = arith.index_cast %c0_i32_16 : i32 to index
    %c0_24 = arith.constant 0 : index
    %c0_25 = arith.constant 0 : index
    %63 = vector.load %arg4[%62, %c0_24, %c0_25] : memref<1x8x128xf32, #tpu.memory_space<vmem>>, vector<1x8x128xf32>
    %64 = vector.shape_cast %63 : vector<1x8x128xf32> to vector<8x128xf32>
    %65 = vector.shape_cast %61 : vector<8x128xf32> to vector<1x8x128xf32>
    tpu.vector_store %arg4[%62, %c0_24, %c0_25], %65 {strides = array<i32>} : memref<1x8x128xf32, #tpu.memory_space<vmem>>, vector<1x8x128xf32>,
    %c1_i32 = arith.constant 1 : i32
    %c0_26 = arith.constant 0 : index
    %c0_27 = arith.constant 0 : index
    %c0_28 = arith.constant 0 : index
    %66 = vector.load %arg5[%c0_26, %c0_27, %c0_28] : memref<4x8x32xf32, #tpu.memory_space<vmem>>, vector<1x8x32xf32>
    %67 = vector.shape_cast %66 : vector<1x8x32xf32> to vector<8x32xf32>
    %68 = vector.shape_cast %40 : vector<8x32xf32> to vector<1x8x32xf32>
    tpu.vector_store %arg5[%c0_26, %c0_27, %c0_28], %68 {strides = array<i32>} : memref<4x8x32xf32, #tpu.memory_space<vmem>>, vector<1x8x32xf32>,
    %c1_29 = arith.constant 1 : index
    %c0_30 = arith.constant 0 : index
    %c0_31 = arith.constant 0 : index
    %69 = vector.load %arg5[%c1_29, %c0_30, %c0_31] : memref<4x8x32xf32, #tpu.memory_space<vmem>>, vector<1x8x32xf32>
    %70 = vector.shape_cast %69 : vector<1x8x32xf32> to vector<8x32xf32>
    %71 = vector.shape_cast %59 : vector<8x32xf32> to vector<1x8x32xf32>
    tpu.vector_store %arg5[%c1_29, %c0_30, %c0_31], %71 {strides = array<i32>} : memref<4x8x32xf32, #tpu.memory_space<vmem>>, vector<1x8x32xf32>,
    %c2_32 = arith.constant 2 : index
    %c0_33 = arith.constant 0 : index
    %c0_34 = arith.constant 0 : index
    %72 = vector.load %arg5[%c2_32, %c0_33, %c0_34] : memref<4x8x32xf32, #tpu.memory_space<vmem>>, vector<1x8x32xf32>
    %73 = vector.shape_cast %72 : vector<1x8x32xf32> to vector<8x32xf32>
    %74 = vector.shape_cast %38 : vector<8x32xf32> to vector<1x8x32xf32>
    tpu.vector_store %arg5[%c2_32, %c0_33, %c0_34], %74 {strides = array<i32>} : memref<4x8x32xf32, #tpu.memory_space<vmem>>, vector<1x8x32xf32>,
    %c3_35 = arith.constant 3 : index
    %c0_36 = arith.constant 0 : index
    %c0_37 = arith.constant 0 : index
    %75 = vector.load %arg5[%c3_35, %c0_36, %c0_37] : memref<4x8x32xf32, #tpu.memory_space<vmem>>, vector<1x8x32xf32>
    %76 = vector.shape_cast %75 : vector<1x8x32xf32> to vector<8x32xf32>
    %77 = vector.shape_cast %57 : vector<8x32xf32> to vector<1x8x32xf32>
    tpu.vector_store %arg5[%c3_35, %c0_36, %c0_37], %77 {strides = array<i32>} : memref<4x8x32xf32, #tpu.memory_space<vmem>>, vector<1x8x32xf32>,
    return
  }
  func.func @transform_0(%arg0: i32) -> (i32, i32) {
    %c0_i32 = arith.constant 0 : i32
    %c0_i32_0 = arith.constant 0 : i32
    %c0_i32_1 = arith.constant 0 : i32
    return %c0_i32, %c0_i32_0 : i32, i32
  }
  func.func @transform_1(%arg0: i32) -> (i32, i32, i32) {
    %c0_i32 = arith.constant 0 : i32
    %c0_i32_0 = arith.constant 0 : i32
    %c0_i32_1 = arith.constant 0 : i32
    %c0_i32_2 = arith.constant 0 : i32
    return %c0_i32, %c0_i32_0, %c0_i32_1 : i32, i32, i32
  }
  func.func @transform_2(%arg0: i32) -> (i32, i32, i32) {
    %c0_i32 = arith.constant 0 : i32
    %c0_i32_0 = arith.constant 0 : i32
    %c0_i32_1 = arith.constant 0 : i32
    return %arg0, %c0_i32, %c0_i32_0 : i32, i32, i32
  }
  func.func @transform_3(%arg0: i32) -> (i32, i32, i32) {
    %c0_i32 = arith.constant 0 : i32
    %c0_i32_0 = arith.constant 0 : i32
    %c0_i32_1 = arith.constant 0 : i32
    return %arg0, %c0_i32, %c0_i32_0 : i32, i32, i32
  }
  func.func @transform_4(%arg0: i32) -> (i32, i32, i32) {
    %c0_i32 = arith.constant 0 : i32
    %c0_i32_0 = arith.constant 0 : i32
    %c0_i32_1 = arith.constant 0 : i32
    %c0_i32_2 = arith.constant 0 : i32
    return %c0_i32, %c0_i32_0, %c0_i32_1 : i32, i32, i32
  }
}

</mosaic_0001>

<llo_original>
// kernel: decoder_forward_multistep.1
$region0: #{decoder_forward_multistep.1}
  #allocation0 [shape = 'u32[]', space=smem, size = 0x4, offset = 0x4, fixed_abs, tag = 'smem constant byte address 0x4 - core index']
  #allocation1 [shape = 'u32[72,128]{1,0:T(1,128)}', space=vmem, size = 0x9000, scoped, tag = 'internal scratch']
  %s0 = inlined_call_operand.hbm [shape: f32[144,128], index: 0, kind: input, shape index: {}]
  %s1 = inlined_call_operand.vmem [shape: f32[4,8,32], index: 1, kind: input, shape index: {}]
  %s2 = inlined_call_operand.vmem [shape: f32[1,8,128], index: 2, kind: input, shape index: {}]
  %s3 = inlined_call_operand.hbm [shape: f32[1,8,128], index: 3, kind: output, shape index: {0}]
  %s4 = inlined_call_operand.vmem [shape: f32[4,8,32], index: 4, kind: output, shape index: {1}]
  %5 = xla_tuple %s3, %s4
  %s6 = sld [smem:[#allocation0]]
  $region38: #{decoder_forward_multistep.1} parent=0
    _
  %s8 = ssub.s32 1, %s6
  %s9 = scalar_select 0, %s8, %s6
  $region1: #{decoder_forward_multistep.1} parent=0
    #allocation2 [shape = 'u8[73728]{0}', space=vmem, size = 0x12000, scoped, tag = 'input window, operand 0, single buffered']
    #allocation3 [shape = 's32[1]{0}', space=sflag, size = 0x4, scoped, tag = 'scoped memory for decoder_forward_multistep.1']
    #allocation4 [shape = 's32[1]{0}', space=sflag, size = 0x4, scoped, tag = 'scoped memory for decoder_forward_multistep.1']
    #allocation5 [shape = 'u8[4096]{0}', space=vmem, size = 0x1000, scoped, tag = 'output window, operand 0, single buffered']
    %10 = vsyncpa [#allocation3], 0
    %11 = vsyncpa [#allocation4], 0
    // Predicated region
    $region2: #{decoder_forward_multistep.1} parent=1 // pred_check
      _
    $region3: #{decoder_forward_multistep.1} parent=1 // pred_check_branch
      %13 = sbr.rel (0) target = $region5
    $region4: #{decoder_forward_multistep.1} parent=1 // pred_region
      %15 = vsyncadd [#allocation3], 0
      %s16 = sshll.u32 %s0, 4
      %s17 = int_to_ptr.hbm [resolvable:$true] %s16
      %s18 = sshll.u32 [#allocation2], 4
      %s19 = int_to_ptr.vmem [resolvable:$true] %s18
      %24 = dma.hbm_to_vmem [thread:$0]  %s17, 2304, %s19, [#allocation3], 128, 128, 8
    $region5: #{decoder_forward_multistep.1} parent=1 // pred_fallthru
      _
    // Predicated region
    $region6: #{decoder_forward_multistep.1} parent=1 // pred_check
      _
    $region7: #{decoder_forward_multistep.1} parent=1 // pred_check_branch
      %26 = sbr.rel (0) target = $region9
    $region8: #{decoder_forward_multistep.1} parent=1 // pred_region
      _
    $region9: #{decoder_forward_multistep.1} parent=1 // pred_fallthru
      _
    // Predicated region
    $region10: #{decoder_forward_multistep.1} parent=1 // pred_check
      _
    $region11: #{decoder_forward_multistep.1} parent=1 // pred_check_branch
      %28 = sbr.rel (0) target = $region13
    $region12: #{decoder_forward_multistep.1} parent=1 // pred_region
      _
    $region13: #{decoder_forward_multistep.1} parent=1 // pred_fallthru
      _
    // Predicated region
    $region14: #{decoder_forward_multistep.1} parent=1 // pred_check
      _
    $region15: #{decoder_forward_multistep.1} parent=1 // pred_check_branch
      %30 = sbr.rel (0) target = $region17
    $region16: #{decoder_forward_multistep.1} parent=1 // pred_region
      %32 = dma.done [#allocation3], 2304
    $region17: #{decoder_forward_multistep.1} parent=1 // pred_fallthru
      _
    %p33 = scmp.eq.s32.totalorder 0, 0
    // Predicated region
    $region18: #{decoder_forward_multistep.1} parent=1 // pred_check
      %p34 = pneg %p33
    $region19: #{decoder_forward_multistep.1} parent=1 // pred_check_branch
      %36 = sbr.rel (%p34) target = $region21
    $region20: #{decoder_forward_multistep.1} parent=1 // pred_region
      %v37 = vld [vmem:[%s1] sm:$0xff]
      %v38 = vld [vmem:[%s1 + $0x8] sm:$0xff]
      %v39 = vld [vmem:[%s1 + $0x10] sm:$0xff]
      %v40 = vld [vmem:[%s1 + $0x18] sm:$0xff]
      %vm41 = vcmask 261120
      %42 = vst.msk [vmem:[%s4] sm:$0xff] %vm41, %v37
      %43 = vst.msk [vmem:[%s4 + $0x8] sm:$0xff] %vm41, %v38
      %44 = vst.msk [vmem:[%s4 + $0x10] sm:$0xff] %vm41, %v39
      %45 = vst.msk [vmem:[%s4 + $0x18] sm:$0xff] %vm41, %v40
    $region21: #{decoder_forward_multistep.1} parent=1 // pred_fallthru
      _
    %v46 = vld [vmem:[#allocation2] sm:$0xff]
    %v47 = vld [vmem:[#allocation2 + $0x8] sm:$0xff]
    %v48 = vld [vmem:[#allocation2 + $0x10] sm:$0xff]
    %v49 = vld [vmem:[#allocation2 + $0x18] sm:$0xff]
    %v50 = vld [vmem:[#allocation2 + $0x20] sm:$0xff]
    %v51 = vld [vmem:[#allocation2 + $0x28] sm:$0xff]
    %v52 = vld [vmem:[#allocation2 + $0x30] sm:$0xff]
    %v53 = vld [vmem:[#allocation2 + $0x38] sm:$0xff]
    %v54 = vld [vmem:[#allocation2 + $0x40] sm:$0xff]
    %v55 = vld [vmem:[#allocation2 + $0x48] sm:$0xff]
    %v56 = vld [vmem:[#allocation2 + $0x50] sm:$0xff]
    %v57 = vld [vmem:[#allocation2 + $0x58] sm:$0xff]
    %v58 = vld [vmem:[#allocation2 + $0x68] sm:$0xff]
    %v59 = vld [vmem:[#allocation2 + $0x70] sm:$0xff]
    %v60 = vld [vmem:[#allocation2 + $0x78] sm:$0xff]
    %v61 = vld [vmem:[#allocation2 + $0x80] sm:$0xff]
    %v62 = vld [vmem:[#allocation2 + $0x60] sm:$0x1]
    %v63 = vperm.slane %v62, 0
    %v64 = vld [vmem:[#allocation2 + $0x88] sm:$0x1]
    %v65 = vperm.slane %v64, 0
    %v66 = vld [vmem:[%s4] sm:$0xff]
    %s67 = scalar_lea.vmem %s4, 8
    %v68 = vld [vmem:[%s67] sm:$0xff]
    %s69 = scalar_lea.vmem %s4, 16
    %v70 = vld [vmem:[%s69] sm:$0xff]
    %s71 = scalar_lea.vmem %s4, 24
    %v72 = vld [vmem:[%s71] sm:$0xff]
    %v73 = vld [vmem:[%s2] sm:$0xff]
    %vm74 = vcmask 261120
    %v76 = vsel %vm74, %v66, 0
    %78 = vmatpush.msra.mxu0 0.0
    %79 = vmatpush.msra.mxu0 0.0
    %80 = vmatpush.msra.mxu0 0.0
    %81 = vmatpush.msra.mxu0 0.0
    %82 = vmatpush.msra.mxu0 0.0
    %83 = vmatpush.msra.mxu0 0.0
    %84 = vmatpush.msra.mxu0 0.0
    %85 = vmatpush.msra.mxu0 0.0
    %86 = vmatpush.msra.mxu0 0.0
    %87 = vmatpush.msra.mxu0 0.0
    %88 = vmatpush.msra.mxu0 0.0
    %89 = vmatpush.msra.mxu0 0.0
    %90 = vmatpush.msra.mxu0 %v49
    %91 = vmatpush.msra.mxu0 %v48
    %92 = vmatpush.msra.mxu0 %v47
    %93 = vmatpush.msra.mxu0 %v46
    %94 = vmatmul.f32.gmra.mxu0 %v76
    %v95 = vpop.f32.mrf.mxu0
    %v96 = vadd.f32 0.0, %v95
    %97 = vdwg.mxu0
    %v98 = vadd.f32 %v73, %v96
    %v99 = vxor.u32 %v98, 2147483648
    %v100 = vmul.f32 %v99, 1.442695
    %v101 = vpow.pop %v100
    %v102 = vadd.f32 %v101, 1.0
    %v103 = vrcp.pop %v102
    %v104 = vmul.f32 %v102, %v103
    %v105 = vsub.f32 1.0, %v104
    %v106 = vmul.f32 %v103, %v105
    %v107 = vadd.f32 %v103, %v106
    %vm108 = vweird.f32 %v102
    %vm109 = vweird.f32 %v103
    %vm110 = vmor %vm108, %vm109
    %v111 = vsel %vm110, %v103, %v107
    %v112 = vand.u32 2147483647, %v102
    %vm113 = vcmp.eq.f32.partialorder %v112, 8.507059e+37
    %v114 = vand.u32 %v102, 2147483648
    %v115 = vor.u32 1.1754944e-38, %v114
    %v116 = vsel %vm113, %v115, %v111
    %v117 = vmul.f32 1.0, %v116
    %v118 = vtanh.pop %v98
    %120 = vrot.lane.b32.xlu0 %v70, 32
    %v121 = vpop.permute.xlu0 %120
    %v123 = vmul.f32 %v117, %v121
    %125 = vrot.lane.b32.xlu0 %v118, 64
    %v126 = vpop.permute.xlu0 %125
    %v128 = vmul.f32 %v117, %v126
    %130 = vrot.lane.b32.xlu0 %v128, 32
    %v131 = vpop.permute.xlu0 %130
    %v133 = vadd.f32 %v123, %v131
    %v134 = vtanh.pop %v133
    %136 = vrot.lane.b32.xlu0 %v134, 64
    %v137 = vpop.permute.xlu0 %136
    %v139 = vmul.f32 %v117, %v137
    %v141 = vsel %vm74, %v68, 0
    %143 = vmatpush.msra.mxu0 0.0
    %144 = vmatpush.msra.mxu0 0.0
    %145 = vmatpush.msra.mxu0 0.0
    %146 = vmatpush.msra.mxu0 0.0
    %147 = vmatpush.msra.mxu0 0.0
    %148 = vmatpush.msra.mxu0 0.0
    %149 = vmatpush.msra.mxu0 0.0
    %150 = vmatpush.msra.mxu0 0.0
    %151 = vmatpush.msra.mxu0 0.0
    %152 = vmatpush.msra.mxu0 0.0
    %153 = vmatpush.msra.mxu0 0.0
    %154 = vmatpush.msra.mxu0 0.0
    %155 = vmatpush.msra.mxu0 %v57
    %156 = vmatpush.msra.mxu0 %v56
    %157 = vmatpush.msra.mxu0 %v55
    %158 = vmatpush.msra.mxu0 %v54
    %159 = vmatmul.f32.gmra.mxu0 %v141
    %v160 = vpop.f32.mrf.mxu0
    %v161 = vadd.f32 0.0, %v160
    %162 = vdwg.mxu0
    %164 = vrot.lane.b32.xlu0 %v139, 32
    %v165 = vpop.permute.xlu0 %164
    %v166 = vsel %vm74, %v165, 0
    %168 = vmatpush.msra.mxu0 0.0
    %169 = vmatpush.msra.mxu0 0.0
    %170 = vmatpush.msra.mxu0 0.0
    %171 = vmatpush.msra.mxu0 0.0
    %172 = vmatpush.msra.mxu0 0.0
    %173 = vmatpush.msra.mxu0 0.0
    %174 = vmatpush.msra.mxu0 0.0
    %175 = vmatpush.msra.mxu0 0.0
    %176 = vmatpush.msra.mxu0 0.0
    %177 = vmatpush.msra.mxu0 0.0
    %178 = vmatpush.msra.mxu0 0.0
    %179 = vmatpush.msra.mxu0 0.0
    %180 = vmatpush.msra.mxu0 %v53
    %181 = vmatpush.msra.mxu0 %v52
    %182 = vmatpush.msra.mxu0 %v51
    %183 = vmatpush.msra.mxu0 %v50
    %184 = vmatmul.f32.gmra.mxu0 %v166
    %v185 = vpop.f32.mrf.mxu0
    %v186 = vadd.f32 %v161, %v185
    %187 = vdwg.mxu0
    %v188 = vadd.f32 %v186, %v63
    %v189 = vxor.u32 %v188, 2147483648
    %v190 = vmul.f32 %v189, 1.442695
    %v191 = vpow.pop %v190
    %v192 = vadd.f32 %v191, 1.0
    %v193 = vrcp.pop %v192
    %v194 = vmul.f32 %v192, %v193
    %v195 = vsub.f32 1.0, %v194
    %v196 = vmul.f32 %v193, %v195
    %v197 = vadd.f32 %v193, %v196
    %vm198 = vweird.f32 %v192
    %vm199 = vweird.f32 %v193
    %vm200 = vmor %vm198, %vm199
    %v201 = vsel %vm200, %v193, %v197
    %v202 = vand.u32 2147483647, %v192
    %vm203 = vcmp.eq.f32.partialorder %v202, 8.507059e+37
    %v204 = vand.u32 %v192, 2147483648
    %v205 = vor.u32 1.1754944e-38, %v204
    %v206 = vsel %vm203, %v205, %v201
    %v207 = vmul.f32 1.0, %v206
    %v208 = vtanh.pop %v188
    %210 = vrot.lane.b32.xlu0 %v72, 32
    %v211 = vpop.permute.xlu0 %210
    %v213 = vmul.f32 %v207, %v211
    %215 = vrot.lane.b32.xlu0 %v208, 64
    %v216 = vpop.permute.xlu0 %215
    %v218 = vmul.f32 %v207, %v216
    %220 = vrot.lane.b32.xlu0 %v218, 32
    %v221 = vpop.permute.xlu0 %220
    %v223 = vadd.f32 %v213, %v221
    %v224 = vtanh.pop %v223
    %226 = vrot.lane.b32.xlu0 %v224, 64
    %v227 = vpop.permute.xlu0 %226
    %v229 = vmul.f32 %v207, %v227
    %231 = vrot.lane.b32.xlu0 %v229, 32
    %v232 = vpop.permute.xlu0 %231
    %v233 = vsel %vm74, %v232, 0
    %235 = vmatpush.msra.mxu0 0.0
    %236 = vmatpush.msra.mxu0 0.0
    %237 = vmatpush.msra.mxu0 0.0
    %238 = vmatpush.msra.mxu0 0.0
    %239 = vmatpush.msra.mxu0 0.0
    %240 = vmatpush.msra.mxu0 0.0
    %241 = vmatpush.msra.mxu0 0.0
    %242 = vmatpush.msra.mxu0 0.0
    %243 = vmatpush.msra.mxu0 0.0
    %244 = vmatpush.msra.mxu0 0.0
    %245 = vmatpush.msra.mxu0 0.0
    %246 = vmatpush.msra.mxu0 0.0
    %247 = vmatpush.msra.mxu0 %v61
    %248 = vmatpush.msra.mxu0 %v60
    %249 = vmatpush.msra.mxu0 %v59
    %250 = vmatpush.msra.mxu0 %v58
    %251 = vmatmul.f32.gmra.mxu0 %v233
    %v252 = vpop.f32.mrf.mxu0
    %v253 = vadd.f32 %v65, %v252
    %254 = vdwg.mxu0
    %255 = vst [vmem:[#allocation5] sm:$0xff] %v253
    %257 = vst.msk [vmem:[%s4] sm:$0xff] %vm74, %v165
    %259 = vst.msk [vmem:[%s67] sm:$0xff] %vm74, %v232
    %261 = vrot.lane.b32.xlu0 %v133, 96
    %v262 = vpop.permute.xlu0 %261
    %264 = vst.msk [vmem:[%s69] sm:$0xff] %vm74, %v262
    %266 = vrot.lane.b32.xlu0 %v223, 96
    %v267 = vpop.permute.xlu0 %266
    %269 = vst.msk [vmem:[%s71] sm:$0xff] %vm74, %v267
    // Predicated region
    $region22: #{decoder_forward_multistep.1} parent=1 // pred_check
      _
    $region23: #{decoder_forward_multistep.1} parent=1 // pred_check_branch
      %271 = sbr.rel (0) target = $region25
    $region24: #{decoder_forward_multistep.1} parent=1 // pred_region
      %273 = vsyncadd [#allocation4], 0
      %s275 = sshll.u32 [#allocation5], 4
      %s276 = int_to_ptr.vmem [resolvable:$true] %s275
      %s277 = sshll.u32 %s3, 4
      %s278 = int_to_ptr.hbm [resolvable:$true] %s277
      %280 = dma.vmem_to_hbm [thread:$0]  %s276, 128, %s278, [#allocation4]
    $region25: #{decoder_forward_multistep.1} parent=1 // pred_fallthru
      _
    // Predicated region
    $region26: #{decoder_forward_multistep.1} parent=1 // pred_check
      _
    $region27: #{decoder_forward_multistep.1} parent=1 // pred_check_branch
      %282 = sbr.rel (0) target = $region29
    $region28: #{decoder_forward_multistep.1} parent=1 // pred_region
      _
    $region29: #{decoder_forward_multistep.1} parent=1 // pred_fallthru
      _
    // Predicated region
    $region30: #{decoder_forward_multistep.1} parent=1 // pred_check
      _
    $region31: #{decoder_forward_multistep.1} parent=1 // pred_check_branch
      %284 = sbr.rel (0) target = $region33
    $region32: #{decoder_forward_multistep.1} parent=1 // pred_region
      %286 = dma.done [#allocation4], 128
    $region33: #{decoder_forward_multistep.1} parent=1 // pred_fallthru
      _
    // Predicated region
    $region34: #{decoder_forward_multistep.1} parent=1 // pred_check
      _
    $region35: #{decoder_forward_multistep.1} parent=1 // pred_check_branch
      %288 = sbr.rel (0) target = $region37
    $region36: #{decoder_forward_multistep.1} parent=1 // pred_region
      _
    $region37: #{decoder_forward_multistep.1} parent=1 // pred_fallthru
      _
    %289 = vsyncpa [#allocation3], 1
    %290 = vsyncpa [#allocation4], 1

</llo_original>
